<compile_context>
chip_gen: v7x
topology: tpu7x:2x2x1
jax: 0.10.0
libtpu: 0.0.40
codegen_flags: <defaults>
</compile_context>

<pallas_src>
import functools

import jax
import jax.numpy as jnp
from jax.experimental import pallas as pl
from jax.experimental.pallas import tpu as pltpu

IN_DIM = 512
H1_DIM = 256
H2_DIM = 128
NUM_CLASSES = 10
PAD_CLASSES = 128          # lane-dense output tile
TILE_B = 128               # max batch tile (full MXU rows, double-buffered)


def mlp_logsoftmax_kernel(x_ref, w1_ref, b1_ref, w2_ref, b2_ref,
                          w3_ref, b3_ref, o_ref):
    # x_ref / w*_ref are bf16; accumulate in f32 on the MXU, epilogue in f32.
    # Layer 1: Linear(512 -> 256) + ReLU
    h1 = jnp.dot(x_ref[...], w1_ref[...], preferred_element_type=jnp.float32)
    h1 = jnp.maximum(h1 + b1_ref[...], 0.0)

    # Layer 2: Linear(256 -> 128) + ReLU
    h2 = jnp.dot(h1.astype(jnp.bfloat16), w2_ref[...],
                 preferred_element_type=jnp.float32)
    h2 = jnp.maximum(h2 + b2_ref[...], 0.0)

    # Layer 3: Linear(128 -> 10), class dim padded to 128 lanes.
    logits = jnp.dot(h2.astype(jnp.bfloat16), w3_ref[...],
                     preferred_element_type=jnp.float32)
    logits = logits + b3_ref[...]

    # Mask padded class columns so they cannot touch the softmax max/denominator.
    col = jax.lax.broadcasted_iota(jnp.int32, logits.shape, 1)
    logits = jnp.where(col < NUM_CLASSES, logits, -1e30)

    # Numerically stable LogSoftmax over the class (lane) axis.
    m = jnp.max(logits, axis=-1, keepdims=True)
    shifted = logits - m
    lse = jnp.log(jnp.sum(jnp.exp(shifted), axis=-1, keepdims=True))
    o_ref[...] = (shifted - lse).astype(o_ref.dtype)


@functools.partial(jax.jit, static_argnames=("tile_b",))
def _mnist_fc_forward_impl(x, params, *, tile_b):
    """x: (B, 512) float32. Returns (B, 10) float32 log-probabilities."""
    w1, b1, w2, b2, w3, b3 = params
    B = x.shape[0]

    # Pad batch to a multiple of the batch tile; pad classes to 128 lanes.
    num_tiles = pl.cdiv(B, tile_b)
    Bp = num_tiles * tile_b
    if Bp != B:
        x = jnp.pad(x, ((0, Bp - B), (0, 0)))

    # bf16 matmul operands (halves the dominant HBM weight traffic); biases f32.
    xb = x.astype(jnp.bfloat16)
    w1b = w1.astype(jnp.bfloat16)
    w2b = w2.astype(jnp.bfloat16)
    w3b = jnp.pad(w3, ((0, 0), (0, PAD_CLASSES - NUM_CLASSES))).astype(jnp.bfloat16)
    b3p = jnp.pad(b3, ((0, 0), (0, PAD_CLASSES - NUM_CLASSES)))

    const = lambda shape: pl.BlockSpec(shape, lambda i: (0, 0))

    out = pl.pallas_call(
        mlp_logsoftmax_kernel,
        out_shape=jax.ShapeDtypeStruct((Bp, PAD_CLASSES), jnp.float32),
        grid=(num_tiles,),
        in_specs=[
            pl.BlockSpec((tile_b, IN_DIM), lambda i: (i, 0)),       # x: tiled over batch
            const((IN_DIM, H1_DIM)), const((1, H1_DIM)),            # w1, b1 (resident)
            const((H1_DIM, H2_DIM)), const((1, H2_DIM)),            # w2, b2 (resident)
            const((H2_DIM, PAD_CLASSES)), const((1, PAD_CLASSES)),  # w3, b3 (resident)
        ],
        out_specs=pl.BlockSpec((tile_b, PAD_CLASSES), lambda i: (i, 0)),
        compiler_params=pltpu.CompilerParams(
            dimension_semantics=("parallel",)),
    )(xb, w1b, b1, w2b, b2, w3b, b3p)

    # TODO(synk): for serving loops, hide the one-shot weight DMA with a
    # cross-pallas_call prefetch (P10 pattern) instead of fetching per call.
    return out[:B, :NUM_CLASSES]


def mnist_fc_forward(x, params):
    B = x.shape[0]
    # Batch tile: multiple of 8 sublanes, capped at TILE_B (avoids over-padding
    # small batches while keeping full-width MXU tiles for large ones).
    tile_b = min(TILE_B, ((B + 7) // 8) * 8)
    return _mnist_fc_forward_impl(x, params, tile_b=tile_b)


def init_params(key):
    """Deterministic init mimicking torch.nn.Linear default (U[-1/sqrt(in), 1/sqrt(in)]).
    Weights are stored transposed: (in_features, out_features)."""
    dims = [(IN_DIM, H1_DIM), (H1_DIM, H2_DIM), (H2_DIM, NUM_CLASSES)]
    params = []
    for (din, dout) in dims:
        key, kw, kb = jax.random.split(key, 3)
        bound = 1.0 / jnp.sqrt(din)
        w = jax.random.uniform(kw, (din, dout), jnp.float32, -bound, bound)
        b = jax.random.uniform(kb, (1, dout), jnp.float32, -bound, bound)
        params += [w, b]
    return tuple(params)


if __name__ == "__main__":
    key = jax.random.PRNGKey(0)
    key, kx = jax.random.split(key)

    B = 8
    x = jax.random.normal(kx, (B, IN_DIM), dtype=jnp.float32)
    params = init_params(key)

    out = mnist_fc_forward(x, params)
    out = jax.block_until_ready(out)
    assert out.shape == (B, NUM_CLASSES)

    # Reference with the same bf16-operand / f32-accumulate scheme (tight check).
    w1, b1, w2, b2, w3, b3 = params
    bf = jnp.bfloat16
    h1 = jnp.maximum(
        jnp.dot(x.astype(bf), w1.astype(bf), preferred_element_type=jnp.float32) + b1, 0.0)
    h2 = jnp.maximum(
        jnp.dot(h1.astype(bf), w2.astype(bf), preferred_element_type=jnp.float32) + b2, 0.0)
    logits = jnp.dot(h2.astype(bf), w3.astype(bf),
                     preferred_element_type=jnp.float32) + b3
    ref_bf16 = jax.nn.log_softmax(logits, axis=-1)
    assert jnp.allclose(out, ref_bf16, atol=1e-4, rtol=1e-4), \
        f"max abs err vs bf16 ref: {jnp.max(jnp.abs(out - ref_bf16))}"

    # Looser check against the full-f32 reference forward pass.
    h1f = jnp.maximum(x @ w1 + b1, 0.0)
    h2f = jnp.maximum(h1f @ w2 + b2, 0.0)
    ref_f32 = jax.nn.log_softmax(h2f @ w3 + b3, axis=-1)
    assert jnp.allclose(out, ref_f32, atol=5e-2, rtol=5e-2), \
        f"max abs err vs f32 ref: {jnp.max(jnp.abs(out - ref_f32))}"

    print("KERNEL_OK")
</pallas_src>

<mosaic_0001>
module attributes {stable_mosaic.version = 11 : i64} {
  func.func @mlp_logsoftmax_kernel(%arg0: i32, %arg1: memref<8x512xbf16, #tpu.memory_space<vmem>>, %arg2: memref<512x256xbf16, #tpu.memory_space<vmem>>, %arg3: memref<1x256xf32, #tpu.memory_space<vmem>>, %arg4: memref<256x128xbf16, #tpu.memory_space<vmem>>, %arg5: memref<1x128xf32, #tpu.memory_space<vmem>>, %arg6: memref<128x128xbf16, #tpu.memory_space<vmem>>, %arg7: memref<1x128xf32, #tpu.memory_space<vmem>>, %arg8: memref<8x128xf32, #tpu.memory_space<vmem>>) attributes {dimension_semantics = [#tpu.dimension_semantics<parallel>], iteration_bounds = array<i64: 1>, scalar_prefetch = 0 : i64, scratch_operands = 0 : i64, tpu.core_type = #tpu.core_type<tc>, window_params = [{transform_indices = @transform_0, window_bounds = array<i64: 8, 512>}, {pipeline_mode = #tpu.pipeline_mode<synchronous>, transform_indices = @transform_1, window_bounds = array<i64: 512, 256>}, {pipeline_mode = #tpu.pipeline_mode<synchronous>, transform_indices = @transform_2, window_bounds = array<i64: 1, 256>}, {pipeline_mode = #tpu.pipeline_mode<synchronous>, transform_indices = @transform_3, window_bounds = array<i64: 256, 128>}, {pipeline_mode = #tpu.pipeline_mode<synchronous>, transform_indices = @transform_4, window_bounds = array<i64: 1, 128>}, {pipeline_mode = #tpu.pipeline_mode<synchronous>, transform_indices = @transform_5, window_bounds = array<i64: 128, 128>}, {pipeline_mode = #tpu.pipeline_mode<synchronous>, transform_indices = @transform_6, window_bounds = array<i64: 1, 128>}, {transform_indices = @transform_7, window_bounds = array<i64: 8, 128>}]} {
    %c0 = arith.constant 0 : index
    %c0_0 = arith.constant 0 : index
    %0 = vector.load %arg1[%c0, %c0_0] : memref<8x512xbf16, #tpu.memory_space<vmem>>, vector<8x512xbf16>
    %c0_1 = arith.constant 0 : index
    %c0_2 = arith.constant 0 : index
    %1 = vector.load %arg2[%c0_1, %c0_2] : memref<512x256xbf16, #tpu.memory_space<vmem>>, vector<512x256xbf16>
    %cst = arith.constant dense<0.000000e+00> : vector<8x256xf32>
    %2 = tpu.matmul %0, %1, %cst {dimension_numbers = #tpu.dot_dimension_numbers<[1], [0], [0], [1], [0, 0, 1, 1], [], []>} : vector<8x512xbf16>, vector<512x256xbf16>, vector<8x256xf32> -> vector<8x256xf32>
    %c0_3 = arith.constant 0 : index
    %c0_4 = arith.constant 0 : index
    %3 = vector.load %arg3[%c0_3, %c0_4] : memref<1x256xf32, #tpu.memory_space<vmem>>, vector<1x256xf32>
    %4 = vector.broadcast %3 : vector<1x256xf32> to vector<8x256xf32>
    %5 = arith.addf %2, %4 : vector<8x256xf32>
    %cst_5 = arith.constant 0.000000e+00 : f32
    %6 = vector.broadcast %cst_5 : f32 to vector<8x256xf32>
    %7 = arith.maximumf %5, %6 : vector<8x256xf32>
    %8 = arith.truncf %7 : vector<8x256xf32> to vector<8x256xbf16>
    %c0_6 = arith.constant 0 : index
    %c0_7 = arith.constant 0 : index
    %9 = vector.load %arg4[%c0_6, %c0_7] : memref<256x128xbf16, #tpu.memory_space<vmem>>, vector<256x128xbf16>
    %cst_8 = arith.constant dense<0.000000e+00> : vector<8x128xf32>
    %10 = tpu.matmul %8, %9, %cst_8 {dimension_numbers = #tpu.dot_dimension_numbers<[1], [0], [0], [1], [0, 0, 1, 1], [], []>} : vector<8x256xbf16>, vector<256x128xbf16>, vector<8x128xf32> -> vector<8x128xf32>
    %c0_9 = arith.constant 0 : index
    %c0_10 = arith.constant 0 : index
    %11 = vector.load %arg5[%c0_9, %c0_10] : memref<1x128xf32, #tpu.memory_space<vmem>>, vector<1x128xf32>
    %12 = vector.broadcast %11 : vector<1x128xf32> to vector<8x128xf32>
    %13 = arith.addf %10, %12 : vector<8x128xf32>
    %cst_11 = arith.constant 0.000000e+00 : f32
    %14 = vector.broadcast %cst_11 : f32 to vector<8x128xf32>
    %15 = arith.maximumf %13, %14 : vector<8x128xf32>
    %16 = arith.truncf %15 : vector<8x128xf32> to vector<8x128xbf16>
    %c0_12 = arith.constant 0 : index
    %c0_13 = arith.constant 0 : index
    %17 = vector.load %arg6[%c0_12, %c0_13] : memref<128x128xbf16, #tpu.memory_space<vmem>>, vector<128x128xbf16>
    %cst_14 = arith.constant dense<0.000000e+00> : vector<8x128xf32>
    %18 = tpu.matmul %16, %17, %cst_14 {dimension_numbers = #tpu.dot_dimension_numbers<[1], [0], [0], [1], [0, 0, 1, 1], [], []>} : vector<8x128xbf16>, vector<128x128xbf16>, vector<8x128xf32> -> vector<8x128xf32>
    %c0_15 = arith.constant 0 : index
    %c0_16 = arith.constant 0 : index
    %19 = vector.load %arg7[%c0_15, %c0_16] : memref<1x128xf32, #tpu.memory_space<vmem>>, vector<1x128xf32>
    %20 = vector.broadcast %19 : vector<1x128xf32> to vector<8x128xf32>
    %21 = arith.addf %18, %20 : vector<8x128xf32>
    %22 = tpu.iota {dimensions = array<i32: 1>} : vector<8x128xi32>
    %c10_i32 = arith.constant 10 : i32
    %23 = vector.broadcast %c10_i32 : i32 to vector<8x128xi32>
    %24 = arith.cmpi slt, %22, %23 : vector<8x128xi32>
    %cst_17 = arith.constant -1.000000e+30 : f32
    %25 = vector.broadcast %cst_17 : f32 to vector<8x128xf32>
    %26 = arith.select %24, %21, %25 : vector<8x128xi1>, vector<8x128xf32>
    %cst_18 = arith.constant dense<0xFF800000> : vector<8xf32>
    %27 = vector.multi_reduction <maximumf>, %26, %cst_18 [1] : vector<8x128xf32> to vector<8xf32>
    %28 = vector.shape_cast %27 : vector<8xf32> to vector<8x1xf32>
    %29 = vector.broadcast %28 : vector<8x1xf32> to vector<8x128xf32>
    %30 = arith.subf %26, %29 : vector<8x128xf32>
    %31 = math.exp %30 : vector<8x128xf32>
    %cst_19 = arith.constant dense<0.000000e+00> : vector<8xf32>
    %32 = vector.multi_reduction <add>, %31, %cst_19 [1] : vector<8x128xf32> to vector<8xf32>
    %33 = vector.shape_cast %32 : vector<8xf32> to vector<8x1xf32>
    %34 = math.log %33 : vector<8x1xf32>
    %35 = vector.broadcast %34 : vector<8x1xf32> to vector<8x128xf32>
    %36 = arith.subf %30, %35 : vector<8x128xf32>
    %c0_20 = arith.constant 0 : index
    %c0_21 = arith.constant 0 : index
    %37 = vector.load %arg8[%c0_20, %c0_21] : memref<8x128xf32, #tpu.memory_space<vmem>>, vector<8x128xf32>
    tpu.vector_store %arg8[%c0_20, %c0_21], %36 {strides = array<i32>} : memref<8x128xf32, #tpu.memory_space<vmem>>, vector<8x128xf32>,
    return
  }
  func.func @transform_0(%arg0: i32) -> (i32, i32) {
    %c0_i32 = arith.constant 0 : i32
    %c0_i32_0 = arith.constant 0 : i32
    return %arg0, %c0_i32 : i32, i32
  }
  func.func @transform_1(%arg0: i32) -> (i32, i32) {
    %c0_i32 = arith.constant 0 : i32
    %c0_i32_0 = arith.constant 0 : i32
    %c0_i32_1 = arith.constant 0 : i32
    return %c0_i32, %c0_i32_0 : i32, i32
  }
  func.func @transform_2(%arg0: i32) -> (i32, i32) {
    %c0_i32 = arith.constant 0 : i32
    %c0_i32_0 = arith.constant 0 : i32
    %c0_i32_1 = arith.constant 0 : i32
    return %c0_i32, %c0_i32_0 : i32, i32
  }
  func.func @transform_3(%arg0: i32) -> (i32, i32) {
    %c0_i32 = arith.constant 0 : i32
    %c0_i32_0 = arith.constant 0 : i32
    %c0_i32_1 = arith.constant 0 : i32
    return %c0_i32, %c0_i32_0 : i32, i32
  }
  func.func @transform_4(%arg0: i32) -> (i32, i32) {
    %c0_i32 = arith.constant 0 : i32
    %c0_i32_0 = arith.constant 0 : i32
    %c0_i32_1 = arith.constant 0 : i32
    return %c0_i32, %c0_i32_0 : i32, i32
  }
  func.func @transform_5(%arg0: i32) -> (i32, i32) {
    %c0_i32 = arith.constant 0 : i32
    %c0_i32_0 = arith.constant 0 : i32
    %c0_i32_1 = arith.constant 0 : i32
    return %c0_i32, %c0_i32_0 : i32, i32
  }
  func.func @transform_6(%arg0: i32) -> (i32, i32) {
    %c0_i32 = arith.constant 0 : i32
    %c0_i32_0 = arith.constant 0 : i32
    %c0_i32_1 = arith.constant 0 : i32
    return %c0_i32, %c0_i32_0 : i32, i32
  }
  func.func @transform_7(%arg0: i32) -> (i32, i32) {
    %c0_i32 = arith.constant 0 : i32
    %c0_i32_0 = arith.constant 0 : i32
    return %arg0, %c0_i32 : i32, i32
  }
}

</mosaic_0001>

<llo_original>
// kernel: _mnist_fc_forward_impl.1
$region0: #{_mnist_fc_forward_impl.1}
  #allocation0 [shape = 'u32[]', space=smem, size = 0x4, offset = 0x4, fixed_abs, tag = 'smem constant byte address 0x4 - core index']
  #allocation1 [shape = 'u32[144,128]{1,0:T(1,128)}', space=vmem, size = 0x12000, scoped, tag = 'internal scratch']
  %s0 = inlined_call_operand.vmem [shape: bf16[8,512], index: 0, kind: input, shape index: {}]
  %s1 = inlined_call_operand.vmem [shape: bf16[512,256], index: 1, kind: input, shape index: {}]
  %s2 = inlined_call_operand.vmem [shape: f32[1,256], index: 2, kind: input, shape index: {}]
  %s3 = inlined_call_operand.vmem [shape: bf16[256,128], index: 3, kind: input, shape index: {}]
  %s4 = inlined_call_operand.vmem [shape: f32[1,128], index: 4, kind: input, shape index: {}]
  %s5 = inlined_call_operand.vmem [shape: bf16[128,128], index: 5, kind: input, shape index: {}]
  %s6 = inlined_call_operand.vmem [shape: f32[1,128], index: 6, kind: input, shape index: {}]
  %s7 = inlined_call_operand.hbm [shape: f32[8,128], index: 7, kind: output, shape index: {}]
  %s8 = sld [smem:[#allocation0]]
  $region38: #{_mnist_fc_forward_impl.1} parent=0
    _
  %s10 = ssub.s32 1, %s8
  %s11 = scalar_select 0, %s10, %s8
  $region1: #{_mnist_fc_forward_impl.1} parent=0
    #allocation2 [shape = 'u8[4096]{0}', space=vmem, size = 0x1000, scoped, tag = 'output window, operand 0, single buffered']
    #allocation3 [shape = 's32[1]{0}', space=sflag, size = 0x4, scoped, tag = 'scoped memory for _mnist_fc_forward_impl.1']
    %12 = vsyncpa [#allocation3], 0
    // Predicated region
    $region2: #{_mnist_fc_forward_impl.1} parent=1 // pred_check
      _
    $region3: #{_mnist_fc_forward_impl.1} parent=1 // pred_check_branch
      %14 = sbr.rel (0) target = $region5
    $region4: #{_mnist_fc_forward_impl.1} parent=1 // pred_region
      _
    $region5: #{_mnist_fc_forward_impl.1} parent=1 // pred_fallthru
      _
    // Predicated region
    $region6: #{_mnist_fc_forward_impl.1} parent=1 // pred_check
      _
    $region7: #{_mnist_fc_forward_impl.1} parent=1 // pred_check_branch
      %16 = sbr.rel (0) target = $region9
    $region8: #{_mnist_fc_forward_impl.1} parent=1 // pred_region
      _
    $region9: #{_mnist_fc_forward_impl.1} parent=1 // pred_fallthru
      _
    // Predicated region
    $region10: #{_mnist_fc_forward_impl.1} parent=1 // pred_check
      _
    $region11: #{_mnist_fc_forward_impl.1} parent=1 // pred_check_branch
      %18 = sbr.rel (0) target = $region13
    $region12: #{_mnist_fc_forward_impl.1} parent=1 // pred_region
      _
    $region13: #{_mnist_fc_forward_impl.1} parent=1 // pred_fallthru
      _
    // Predicated region
    $region14: #{_mnist_fc_forward_impl.1} parent=1 // pred_check
      _
    $region15: #{_mnist_fc_forward_impl.1} parent=1 // pred_check_branch
      %20 = sbr.rel (0) target = $region17
    $region16: #{_mnist_fc_forward_impl.1} parent=1 // pred_region
      _
    $region17: #{_mnist_fc_forward_impl.1} parent=1 // pred_fallthru
      _
    // Predicated region
    $region18: #{_mnist_fc_forward_impl.1} parent=1 // pred_check
      _
    $region19: #{_mnist_fc_forward_impl.1} parent=1 // pred_check_branch
      %22 = sbr.rel (0) target = $region21
    $region20: #{_mnist_fc_forward_impl.1} parent=1 // pred_region
      _
    $region21: #{_mnist_fc_forward_impl.1} parent=1 // pred_fallthru
      _
    // Predicated region
    $region22: #{_mnist_fc_forward_impl.1} parent=1 // pred_check
      _
    $region23: #{_mnist_fc_forward_impl.1} parent=1 // pred_check_branch
      %24 = sbr.rel (0) target = $region25
    $region24: #{_mnist_fc_forward_impl.1} parent=1 // pred_region
      _
    $region25: #{_mnist_fc_forward_impl.1} parent=1 // pred_fallthru
      _
    // Predicated region
    $region26: #{_mnist_fc_forward_impl.1} parent=1 // pred_check
      _
    $region27: #{_mnist_fc_forward_impl.1} parent=1 // pred_check_branch
      %26 = sbr.rel (0) target = $region29
    $region28: #{_mnist_fc_forward_impl.1} parent=1 // pred_region
      _
    $region29: #{_mnist_fc_forward_impl.1} parent=1 // pred_fallthru
      _
    %v28 = vld [vmem:[%s0] sm:$0xff]
    %v29 = vld [vmem:[%s0 + $0x8] sm:$0xff]
    %v30 = vld [vmem:[%s1] sm:$0xff]
    %v31 = vld [vmem:[%s1 + $0x8] sm:$0xff]
    %v32 = vld [vmem:[%s1 + $0x10] sm:$0xff]
    %v33 = vld [vmem:[%s1 + $0x18] sm:$0xff]
    %v34 = vld [vmem:[%s1 + $0x20] sm:$0xff]
    %v35 = vld [vmem:[%s1 + $0x28] sm:$0xff]
    %v36 = vld [vmem:[%s1 + $0x30] sm:$0xff]
    %v37 = vld [vmem:[%s1 + $0x38] sm:$0xff]
    %v38 = vld [vmem:[%s1 + $0x40] sm:$0xff]
    %v39 = vld [vmem:[%s1 + $0x48] sm:$0xff]
    %v40 = vld [vmem:[%s1 + $0x50] sm:$0xff]
    %v41 = vld [vmem:[%s1 + $0x58] sm:$0xff]
    %v42 = vld [vmem:[%s1 + $0x60] sm:$0xff]
    %v43 = vld [vmem:[%s1 + $0x68] sm:$0xff]
    %v44 = vld [vmem:[%s1 + $0x70] sm:$0xff]
    %v45 = vld [vmem:[%s1 + $0x78] sm:$0xff]
    %v46 = vld [vmem:[%s1 + $0x80] sm:$0xff]
    %v47 = vld [vmem:[%s1 + $0x88] sm:$0xff]
    %v48 = vld [vmem:[%s1 + $0x90] sm:$0xff]
    %v49 = vld [vmem:[%s1 + $0x98] sm:$0xff]
    %v50 = vld [vmem:[%s1 + $0xa0] sm:$0xff]
    %v51 = vld [vmem:[%s1 + $0xa8] sm:$0xff]
    %v52 = vld [vmem:[%s1 + $0xb0] sm:$0xff]
    %v53 = vld [vmem:[%s1 + $0xb8] sm:$0xff]
    %v54 = vld [vmem:[%s1 + $0xc0] sm:$0xff]
    %v55 = vld [vmem:[%s1 + $0xc8] sm:$0xff]
    %v56 = vld [vmem:[%s1 + $0xd0] sm:$0xff]
    %v57 = vld [vmem:[%s1 + $0xd8] sm:$0xff]
    %v58 = vld [vmem:[%s1 + $0xe0] sm:$0xff]
    %v59 = vld [vmem:[%s1 + $0xe8] sm:$0xff]
    %v60 = vld [vmem:[%s1 + $0xf0] sm:$0xff]
    %v61 = vld [vmem:[%s1 + $0xf8] sm:$0xff]
    %v62 = vld [vmem:[%s1 + $0x100] sm:$0xff]
    %v63 = vld [vmem:[%s1 + $0x108] sm:$0xff]
    %v64 = vld [vmem:[%s1 + $0x110] sm:$0xff]
    %v65 = vld [vmem:[%s1 + $0x118] sm:$0xff]
    %v66 = vld [vmem:[%s1 + $0x120] sm:$0xff]
    %v67 = vld [vmem:[%s1 + $0x128] sm:$0xff]
    %v68 = vld [vmem:[%s1 + $0x130] sm:$0xff]
    %v69 = vld [vmem:[%s1 + $0x138] sm:$0xff]
    %v70 = vld [vmem:[%s1 + $0x140] sm:$0xff]
    %v71 = vld [vmem:[%s1 + $0x148] sm:$0xff]
    %v72 = vld [vmem:[%s1 + $0x150] sm:$0xff]
    %v73 = vld [vmem:[%s1 + $0x158] sm:$0xff]
    %v74 = vld [vmem:[%s1 + $0x160] sm:$0xff]
    %v75 = vld [vmem:[%s1 + $0x168] sm:$0xff]
    %v76 = vld [vmem:[%s1 + $0x170] sm:$0xff]
    %v77 = vld [vmem:[%s1 + $0x178] sm:$0xff]
    %v78 = vld [vmem:[%s1 + $0x180] sm:$0xff]
    %v79 = vld [vmem:[%s1 + $0x188] sm:$0xff]
    %v80 = vld [vmem:[%s1 + $0x190] sm:$0xff]
    %v81 = vld [vmem:[%s1 + $0x198] sm:$0xff]
    %v82 = vld [vmem:[%s1 + $0x1a0] sm:$0xff]
    %v83 = vld [vmem:[%s1 + $0x1a8] sm:$0xff]
    %v84 = vld [vmem:[%s1 + $0x1b0] sm:$0xff]
    %v85 = vld [vmem:[%s1 + $0x1b8] sm:$0xff]
    %v86 = vld [vmem:[%s1 + $0x1c0] sm:$0xff]
    %v87 = vld [vmem:[%s1 + $0x1c8] sm:$0xff]
    %v88 = vld [vmem:[%s1 + $0x1d0] sm:$0xff]
    %v89 = vld [vmem:[%s1 + $0x1d8] sm:$0xff]
    %v90 = vld [vmem:[%s1 + $0x1e0] sm:$0xff]
    %v91 = vld [vmem:[%s1 + $0x1e8] sm:$0xff]
    %v92 = vld [vmem:[%s1 + $0x1f0] sm:$0xff]
    %v93 = vld [vmem:[%s1 + $0x1f8] sm:$0xff]
    %v94 = vld [vmem:[%s2] sm:$0x3]
    %v96 = vlaneseq
    %v97 = vshrl.u32 %v96, 7
    %v98 = vsub.s32 0, %v97
    %v99 = vrot.slane %v94, %v98
    %v100 = vlaneseq
    %v101 = vshrl.u32 %v100, 7
    %v102 = vsub.s32 1, %v101
    %v103 = vrot.slane %v94, %v102
    %v108 = vunpack.c.l.b16 %v28
    %v109 = vunpack.c.h.b16 %v28
    %v110 = vunpack.c.l.b16 %v29
    %v111 = vunpack.c.h.b16 %v29
    %v112 = vpack.c.b16 %v108, %v108
    %v113 = vpack.c.b16 %v109, %v109
    %v114 = vpack.c.b16 %v110, %v110
    %v115 = vpack.c.b16 %v111, %v111
    %v184 = vunpack.c.l.b16 %v30
    %v185 = vunpack.c.h.b16 %v30
    %v186 = vunpack.c.l.b16 %v31
    %v187 = vunpack.c.h.b16 %v31
    %v188 = vunpack.c.l.b16 %v32
    %v189 = vunpack.c.h.b16 %v32
    %v190 = vunpack.c.l.b16 %v33
    %v191 = vunpack.c.h.b16 %v33
    %v192 = vunpack.c.l.b16 %v34
    %v193 = vunpack.c.h.b16 %v34
    %v194 = vunpack.c.l.b16 %v35
    %v195 = vunpack.c.h.b16 %v35
    %v196 = vunpack.c.l.b16 %v36
    %v197 = vunpack.c.h.b16 %v36
    %v198 = vunpack.c.l.b16 %v37
    %v199 = vunpack.c.h.b16 %v37
    %v200 = vunpack.c.l.b16 %v38
    %v201 = vunpack.c.h.b16 %v38
    %v202 = vunpack.c.l.b16 %v39
    %v203 = vunpack.c.h.b16 %v39
    %v204 = vunpack.c.l.b16 %v40
    %v205 = vunpack.c.h.b16 %v40
    %v206 = vunpack.c.l.b16 %v41
    %v207 = vunpack.c.h.b16 %v41
    %v208 = vunpack.c.l.b16 %v42
    %v209 = vunpack.c.h.b16 %v42
    %v210 = vunpack.c.l.b16 %v43
    %v211 = vunpack.c.h.b16 %v43
    %v212 = vunpack.c.l.b16 %v44
    %v213 = vunpack.c.h.b16 %v44
    %v214 = vunpack.c.l.b16 %v45
    %v215 = vunpack.c.h.b16 %v45
    %v216 = vunpack.c.l.b16 %v46
    %v217 = vunpack.c.h.b16 %v46
    %v218 = vunpack.c.l.b16 %v47
    %v219 = vunpack.c.h.b16 %v47
    %v220 = vunpack.c.l.b16 %v48
    %v221 = vunpack.c.h.b16 %v48
    %v222 = vunpack.c.l.b16 %v49
    %v223 = vunpack.c.h.b16 %v49
    %v224 = vunpack.c.l.b16 %v50
    %v225 = vunpack.c.h.b16 %v50
    %v226 = vunpack.c.l.b16 %v51
    %v227 = vunpack.c.h.b16 %v51
    %v228 = vunpack.c.l.b16 %v52
    %v229 = vunpack.c.h.b16 %v52
    %v230 = vunpack.c.l.b16 %v53
    %v231 = vunpack.c.h.b16 %v53
    %v232 = vunpack.c.l.b16 %v54
    %v233 = vunpack.c.h.b16 %v54
    %v234 = vunpack.c.l.b16 %v55
    %v235 = vunpack.c.h.b16 %v55
    %v236 = vunpack.c.l.b16 %v56
    %v237 = vunpack.c.h.b16 %v56
    %v238 = vunpack.c.l.b16 %v57
    %v239 = vunpack.c.h.b16 %v57
    %v240 = vunpack.c.l.b16 %v58
    %v241 = vunpack.c.h.b16 %v58
    %v242 = vunpack.c.l.b16 %v59
    %v243 = vunpack.c.h.b16 %v59
    %v244 = vunpack.c.l.b16 %v60
    %v245 = vunpack.c.h.b16 %v60
    %v246 = vunpack.c.l.b16 %v61
    %v247 = vunpack.c.h.b16 %v61
    %v248 = vunpack.c.l.b16 %v62
    %v249 = vunpack.c.h.b16 %v62
    %v250 = vunpack.c.l.b16 %v63
    %v251 = vunpack.c.h.b16 %v63
    %v252 = vunpack.c.l.b16 %v64
    %v253 = vunpack.c.h.b16 %v64
    %v254 = vunpack.c.l.b16 %v65
    %v255 = vunpack.c.h.b16 %v65
    %v256 = vunpack.c.l.b16 %v66
    %v257 = vunpack.c.h.b16 %v66
    %v258 = vunpack.c.l.b16 %v67
    %v259 = vunpack.c.h.b16 %v67
    %v260 = vunpack.c.l.b16 %v68
    %v261 = vunpack.c.h.b16 %v68
    %v262 = vunpack.c.l.b16 %v69
    %v263 = vunpack.c.h.b16 %v69
    %v264 = vunpack.c.l.b16 %v70
    %v265 = vunpack.c.h.b16 %v70
    %v266 = vunpack.c.l.b16 %v71
    %v267 = vunpack.c.h.b16 %v71
    %v268 = vunpack.c.l.b16 %v72
    %v269 = vunpack.c.h.b16 %v72
    %v270 = vunpack.c.l.b16 %v73
    %v271 = vunpack.c.h.b16 %v73
    %v272 = vunpack.c.l.b16 %v74
    %v273 = vunpack.c.h.b16 %v74
    %v274 = vunpack.c.l.b16 %v75
    %v275 = vunpack.c.h.b16 %v75
    %v276 = vunpack.c.l.b16 %v76
    %v277 = vunpack.c.h.b16 %v76
    %v278 = vunpack.c.l.b16 %v77
    %v279 = vunpack.c.h.b16 %v77
    %v280 = vunpack.c.l.b16 %v78
    %v281 = vunpack.c.h.b16 %v78
    %v282 = vunpack.c.l.b16 %v79
    %v283 = vunpack.c.h.b16 %v79
    %v284 = vunpack.c.l.b16 %v80
    %v285 = vunpack.c.h.b16 %v80
    %v286 = vunpack.c.l.b16 %v81
    %v287 = vunpack.c.h.b16 %v81
    %v288 = vunpack.c.l.b16 %v82
    %v289 = vunpack.c.h.b16 %v82
    %v290 = vunpack.c.l.b16 %v83
    %v291 = vunpack.c.h.b16 %v83
    %v292 = vunpack.c.l.b16 %v84
    %v293 = vunpack.c.h.b16 %v84
    %v294 = vunpack.c.l.b16 %v85
    %v295 = vunpack.c.h.b16 %v85
    %v296 = vunpack.c.l.b16 %v86
    %v297 = vunpack.c.h.b16 %v86
    %v298 = vunpack.c.l.b16 %v87
    %v299 = vunpack.c.h.b16 %v87
    %v300 = vunpack.c.l.b16 %v88
    %v301 = vunpack.c.h.b16 %v88
    %v302 = vunpack.c.l.b16 %v89
    %v303 = vunpack.c.h.b16 %v89
    %v304 = vunpack.c.l.b16 %v90
    %v305 = vunpack.c.h.b16 %v90
    %v306 = vunpack.c.l.b16 %v91
    %v307 = vunpack.c.h.b16 %v91
    %v308 = vunpack.c.l.b16 %v92
    %v309 = vunpack.c.h.b16 %v92
    %v310 = vunpack.c.l.b16 %v93
    %v311 = vunpack.c.h.b16 %v93
    %v312 = vpack.c.b16 %v186, %v184
    %v313 = vpack.c.b16 %v187, %v185
    %v314 = vpack.c.b16 %v190, %v188
    %v315 = vpack.c.b16 %v191, %v189
    %v316 = vpack.c.b16 %v194, %v192
    %v317 = vpack.c.b16 %v195, %v193
    %v318 = vpack.c.b16 %v198, %v196
    %v319 = vpack.c.b16 %v199, %v197
    %v320 = vpack.c.b16 %v202, %v200
    %v321 = vpack.c.b16 %v203, %v201
    %v322 = vpack.c.b16 %v206, %v204
    %v323 = vpack.c.b16 %v207, %v205
    %v324 = vpack.c.b16 %v210, %v208
    %v325 = vpack.c.b16 %v211, %v209
    %v326 = vpack.c.b16 %v214, %v212
    %v327 = vpack.c.b16 %v215, %v213
    %v328 = vpack.c.b16 %v218, %v216
    %v329 = vpack.c.b16 %v219, %v217
    %v330 = vpack.c.b16 %v222, %v220
    %v331 = vpack.c.b16 %v223, %v221
    %v332 = vpack.c.b16 %v226, %v224
    %v333 = vpack.c.b16 %v227, %v225
    %v334 = vpack.c.b16 %v230, %v228
    %v335 = vpack.c.b16 %v231, %v229
    %v336 = vpack.c.b16 %v234, %v232
    %v337 = vpack.c.b16 %v235, %v233
    %v338 = vpack.c.b16 %v238, %v236
    %v339 = vpack.c.b16 %v239, %v237
    %v340 = vpack.c.b16 %v242, %v240
    %v341 = vpack.c.b16 %v243, %v241
    %v342 = vpack.c.b16 %v246, %v244
    %v343 = vpack.c.b16 %v247, %v245
    %v344 = vpack.c.b16 %v250, %v248
    %v345 = vpack.c.b16 %v251, %v249
    %v346 = vpack.c.b16 %v254, %v252
    %v347 = vpack.c.b16 %v255, %v253
    %v348 = vpack.c.b16 %v258, %v256
    %v349 = vpack.c.b16 %v259, %v257
    %v350 = vpack.c.b16 %v262, %v260
    %v351 = vpack.c.b16 %v263, %v261
    %v352 = vpack.c.b16 %v266, %v264
    %v353 = vpack.c.b16 %v267, %v265
    %v354 = vpack.c.b16 %v270, %v268
    %v355 = vpack.c.b16 %v271, %v269
    %v356 = vpack.c.b16 %v274, %v272
    %v357 = vpack.c.b16 %v275, %v273
    %v358 = vpack.c.b16 %v278, %v276
    %v359 = vpack.c.b16 %v279, %v277
    %v360 = vpack.c.b16 %v282, %v280
    %v361 = vpack.c.b16 %v283, %v281
    %v362 = vpack.c.b16 %v286, %v284
    %v363 = vpack.c.b16 %v287, %v285
    %v364 = vpack.c.b16 %v290, %v288
    %v365 = vpack.c.b16 %v291, %v289
    %v366 = vpack.c.b16 %v294, %v292
    %v367 = vpack.c.b16 %v295, %v293
    %v368 = vpack.c.b16 %v298, %v296
    %v369 = vpack.c.b16 %v299, %v297
    %v370 = vpack.c.b16 %v302, %v300
    %v371 = vpack.c.b16 %v303, %v301
    %v372 = vpack.c.b16 %v306, %v304
    %v373 = vpack.c.b16 %v307, %v305
    %v374 = vpack.c.b16 %v310, %v308
    %v375 = vpack.c.b16 %v311, %v309
    %440 = vmatprep.subr.bf16.mxu0 %v313
    %441 = vmatpush1.bf16.msra.mxu0 %v312
    %442 = vmatprep.subr.bf16.mxu0 %v315
    %443 = vmatpush1.bf16.msra.mxu0 %v314
    %444 = vmatprep.subr.bf16.mxu0 %v317
    %445 = vmatpush1.bf16.msra.mxu0 %v316
    %446 = vmatprep.subr.bf16.mxu0 %v319
    %447 = vmatpush1.bf16.msra.mxu0 %v318
    %448 = vmatprep.subr.bf16.mxu0 %v321
    %449 = vmatpush1.bf16.msra.mxu0 %v320
    %450 = vmatprep.subr.bf16.mxu0 %v323
    %451 = vmatpush1.bf16.msra.mxu0 %v322
    %452 = vmatprep.subr.bf16.mxu0 %v325
    %453 = vmatpush1.bf16.msra.mxu0 %v324
    %454 = vmatprep.subr.bf16.mxu0 %v327
    %455 = vmatpush1.bf16.msra.mxu0 %v326
    %456 = vmatprep.subr.bf16.mxu0 %v329
    %457 = vmatpush1.bf16.msra.mxu0 %v328
    %458 = vmatprep.subr.bf16.mxu0 %v331
    %459 = vmatpush1.bf16.msra.mxu0 %v330
    %460 = vmatprep.subr.bf16.mxu0 %v333
    %461 = vmatpush1.bf16.msra.mxu0 %v332
    %462 = vmatprep.subr.bf16.mxu0 %v335
    %463 = vmatpush1.bf16.msra.mxu0 %v334
    %464 = vmatprep.subr.bf16.mxu0 %v337
    %465 = vmatpush1.bf16.msra.mxu0 %v336
    %466 = vmatprep.subr.bf16.mxu0 %v339
    %467 = vmatpush1.bf16.msra.mxu0 %v338
    %468 = vmatprep.subr.bf16.mxu0 %v341
    %469 = vmatpush1.bf16.msra.mxu0 %v340
    %470 = vmatprep.subr.bf16.mxu0 %v343
    %471 = vmatpush1.bf16.msra.mxu0 %v342
    %472 = vmatprep.mubr.bf16.mxu0 %v113
    %473 = vmatmul.mubr.bf16.gmra.mrb[0].mxu0 %v112
    %v474 = vpop.f32.mrb[0].mxu0
    %v475 = vadd.f32 %v99, %v474
    %v476 = vpop.f32.mrb[0].mxu0
    %v477 = vadd.f32 %v103, %v476
    %v478 = vpop.f32.mrb[0].mxu0
    %v479 = vpop.f32.mrb[0].mxu0
    %480 = vdwg.mxu0
    %481 = vmatprep.subr.bf16.mxu0 %v345
    %482 = vmatpush1.bf16.msra.mxu0 %v344
    %483 = vmatprep.subr.bf16.mxu0 %v347
    %484 = vmatpush1.bf16.msra.mxu0 %v346
    %485 = vmatprep.subr.bf16.mxu0 %v349
    %486 = vmatpush1.bf16.msra.mxu0 %v348
    %487 = vmatprep.subr.bf16.mxu0 %v351
    %488 = vmatpush1.bf16.msra.mxu0 %v350
    %489 = vmatprep.subr.bf16.mxu0 %v353
    %490 = vmatpush1.bf16.msra.mxu0 %v352
    %491 = vmatprep.subr.bf16.mxu0 %v355
    %492 = vmatpush1.bf16.msra.mxu0 %v354
    %493 = vmatprep.subr.bf16.mxu0 %v357
    %494 = vmatpush1.bf16.msra.mxu0 %v356
    %495 = vmatprep.subr.bf16.mxu0 %v359
    %496 = vmatpush1.bf16.msra.mxu0 %v358
    %497 = vmatprep.subr.bf16.mxu0 %v361
    %498 = vmatpush1.bf16.msra.mxu0 %v360
    %499 = vmatprep.subr.bf16.mxu0 %v363
    %500 = vmatpush1.bf16.msra.mxu0 %v362
    %501 = vmatprep.subr.bf16.mxu0 %v365
    %502 = vmatpush1.bf16.msra.mxu0 %v364
    %503 = vmatprep.subr.bf16.mxu0 %v367
    %504 = vmatpush1.bf16.msra.mxu0 %v366
    %505 = vmatprep.subr.bf16.mxu0 %v369
    %506 = vmatpush1.bf16.msra.mxu0 %v368
    %507 = vmatprep.subr.bf16.mxu0 %v371
    %508 = vmatpush1.bf16.msra.mxu0 %v370
    %509 = vmatprep.subr.bf16.mxu0 %v373
    %510 = vmatpush1.bf16.msra.mxu0 %v372
    %511 = vmatprep.subr.bf16.mxu0 %v375
    %512 = vmatpush1.bf16.msra.mxu0 %v374
    %513 = vmatprep.mubr.bf16.mxu0 %v115
    %514 = vmatmul.mubr.bf16.gmra.mrb[0].mxu0 %v114
    %v515 = vpop.f32.mrb[0].mxu0
    %v516 = vadd.f32 %v475, %v515
    %v517 = vpop.f32.mrb[0].mxu0
    %v518 = vadd.f32 %v477, %v517
    %v519 = vpop.f32.mrb[0].mxu0
    %v520 = vpop.f32.mrb[0].mxu0
    %521 = vdwg.mxu0
    %v522 = vmax.f32 %v516, 0.0
    %v523 = vmax.f32 %v518, 0.0
    %v524 = vpack.c.bf16 %v522, %v522
    %v525 = vpack.c.bf16 %v523, %v523
    %v526 = vld [vmem:[%s3] sm:$0xf]
    %v527 = vld [vmem:[%s3 + $0x4] sm:$0xf]
    %v528 = vld [vmem:[%s3 + $0x8] sm:$0xf]
    %v529 = vld [vmem:[%s3 + $0xc] sm:$0xf]
    %v530 = vld [vmem:[%s3 + $0x10] sm:$0xf]
    %v531 = vld [vmem:[%s3 + $0x14] sm:$0xf]
    %v532 = vld [vmem:[%s3 + $0x18] sm:$0xf]
    %v533 = vld [vmem:[%s3 + $0x1c] sm:$0xf]
    %v534 = vld [vmem:[%s3 + $0x20] sm:$0xf]
    %v535 = vld [vmem:[%s3 + $0x24] sm:$0xf]
    %v536 = vld [vmem:[%s3 + $0x28] sm:$0xf]
    %v537 = vld [vmem:[%s3 + $0x2c] sm:$0xf]
    %v538 = vld [vmem:[%s3 + $0x30] sm:$0xf]
    %v539 = vld [vmem:[%s3 + $0x34] sm:$0xf]
    %v540 = vld [vmem:[%s3 + $0x38] sm:$0xf]
    %v541 = vld [vmem:[%s3 + $0x3c] sm:$0xf]
    %v542 = vld [vmem:[%s3 + $0x40] sm:$0xf]
    %v543 = vld [vmem:[%s3 + $0x44] sm:$0xf]
    %v544 = vld [vmem:[%s3 + $0x48] sm:$0xf]
    %v545 = vld [vmem:[%s3 + $0x4c] sm:$0xf]
    %v546 = vld [vmem:[%s3 + $0x50] sm:$0xf]
    %v547 = vld [vmem:[%s3 + $0x54] sm:$0xf]
    %v548 = vld [vmem:[%s3 + $0x58] sm:$0xf]
    %v549 = vld [vmem:[%s3 + $0x5c] sm:$0xf]
    %v550 = vld [vmem:[%s3 + $0x60] sm:$0xf]
    %v551 = vld [vmem:[%s3 + $0x64] sm:$0xf]
    %v552 = vld [vmem:[%s3 + $0x68] sm:$0xf]
    %v553 = vld [vmem:[%s3 + $0x6c] sm:$0xf]
    %v554 = vld [vmem:[%s3 + $0x70] sm:$0xf]
    %v555 = vld [vmem:[%s3 + $0x74] sm:$0xf]
    %v556 = vld [vmem:[%s3 + $0x78] sm:$0xf]
    %v557 = vld [vmem:[%s3 + $0x7c] sm:$0xf]
    %v558 = vld [vmem:[%s4] sm:$0x1]
    %v560 = vlaneseq
    %v561 = vshrl.u32 %v560, 7
    %v562 = vsub.s32 0, %v561
    %v563 = vrot.slane %v558, %v562
    %v597 = vunpack.c.l.b16 %v526
    %v598 = vunpack.c.l.b16 %v527
    %v599 = vunpack.c.l.b16 %v528
    %v600 = vunpack.c.l.b16 %v529
    %v601 = vunpack.c.l.b16 %v530
    %v602 = vunpack.c.l.b16 %v531
    %v603 = vunpack.c.l.b16 %v532
    %v604 = vunpack.c.l.b16 %v533
    %v605 = vunpack.c.l.b16 %v534
    %v606 = vunpack.c.l.b16 %v535
    %v607 = vunpack.c.l.b16 %v536
    %v608 = vunpack.c.l.b16 %v537
    %v609 = vunpack.c.l.b16 %v538
    %v610 = vunpack.c.l.b16 %v539
    %v611 = vunpack.c.l.b16 %v540
    %v612 = vunpack.c.l.b16 %v541
    %v613 = vunpack.c.l.b16 %v542
    %v614 = vunpack.c.l.b16 %v543
    %v615 = vunpack.c.l.b16 %v544
    %v616 = vunpack.c.l.b16 %v545
    %v617 = vunpack.c.l.b16 %v546
    %v618 = vunpack.c.l.b16 %v547
    %v619 = vunpack.c.l.b16 %v548
    %v620 = vunpack.c.l.b16 %v549
    %v621 = vunpack.c.l.b16 %v550
    %v622 = vunpack.c.l.b16 %v551
    %v623 = vunpack.c.l.b16 %v552
    %v624 = vunpack.c.l.b16 %v553
    %v625 = vunpack.c.l.b16 %v554
    %v626 = vunpack.c.l.b16 %v555
    %v627 = vunpack.c.l.b16 %v556
    %v628 = vunpack.c.l.b16 %v557
    %v629 = vpack.c.b16 %v598, %v597
    %v630 = vpack.c.b16 %v600, %v599
    %v631 = vpack.c.b16 %v602, %v601
    %v632 = vpack.c.b16 %v604, %v603
    %v633 = vpack.c.b16 %v606, %v605
    %v634 = vpack.c.b16 %v608, %v607
    %v635 = vpack.c.b16 %v610, %v609
    %v636 = vpack.c.b16 %v612, %v611
    %v637 = vpack.c.b16 %v614, %v613
    %v638 = vpack.c.b16 %v616, %v615
    %v639 = vpack.c.b16 %v618, %v617
    %v640 = vpack.c.b16 %v620, %v619
    %v641 = vpack.c.b16 %v622, %v621
    %v642 = vpack.c.b16 %v624, %v623
    %v643 = vpack.c.b16 %v626, %v625
    %v644 = vpack.c.b16 %v628, %v627
    %661 = vmatprep.subr.bf16.mxu0 0
    %662 = vmatpush1.bf16.msra.mxu0 %v629
    %663 = vmatprep.subr.bf16.mxu0 0
    %664 = vmatpush1.bf16.msra.mxu0 %v630
    %665 = vmatprep.subr.bf16.mxu0 0
    %666 = vmatpush1.bf16.msra.mxu0 %v631
    %667 = vmatprep.subr.bf16.mxu0 0
    %668 = vmatpush1.bf16.msra.mxu0 %v632
    %669 = vmatprep.subr.bf16.mxu0 0
    %670 = vmatpush1.bf16.msra.mxu0 %v633
    %671 = vmatprep.subr.bf16.mxu0 0
    %672 = vmatpush1.bf16.msra.mxu0 %v634
    %673 = vmatprep.subr.bf16.mxu0 0
    %674 = vmatpush1.bf16.msra.mxu0 %v635
    %675 = vmatprep.subr.bf16.mxu0 0
    %676 = vmatpush1.bf16.msra.mxu0 %v636
    %677 = vmatprep.subr.bf16.mxu0 0
    %678 = vmatpush1.bf16.msra.mxu0 %v637
    %679 = vmatprep.subr.bf16.mxu0 0
    %680 = vmatpush1.bf16.msra.mxu0 %v638
    %681 = vmatprep.subr.bf16.mxu0 0
    %682 = vmatpush1.bf16.msra.mxu0 %v639
    %683 = vmatprep.subr.bf16.mxu0 0
    %684 = vmatpush1.bf16.msra.mxu0 %v640
    %685 = vmatprep.subr.bf16.mxu0 0
    %686 = vmatpush1.bf16.msra.mxu0 %v641
    %687 = vmatprep.subr.bf16.mxu0 0
    %688 = vmatpush1.bf16.msra.mxu0 %v642
    %689 = vmatprep.subr.bf16.mxu0 0
    %690 = vmatpush1.bf16.msra.mxu0 %v643
    %691 = vmatprep.subr.bf16.mxu0 0
    %692 = vmatpush1.bf16.msra.mxu0 %v644
    %693 = vmatprep.mubr.bf16.mxu0 %v525
    %694 = vmatmul.mubr.bf16.gmra.mrb[0].mxu0 %v524
    %v695 = vpop.f32.mrb[0].mxu0
    %v696 = vadd.f32 %v563, %v695
    %v697 = vpop.f32.mrb[0].mxu0
    %v698 = vpop.f32.mrb[0].mxu0
    %v699 = vpop.f32.mrb[0].mxu0
    %700 = vdwg.mxu0
    %v701 = vmax.f32 %v696, 0.0
    %v702 = vpack.c.bf16 %v701, %v701
    %v703 = vld [vmem:[%s5] sm:$0xf]
    %v704 = vld [vmem:[%s5 + $0x4] sm:$0xf]
    %v705 = vld [vmem:[%s5 + $0x8] sm:$0xf]
    %v706 = vld [vmem:[%s5 + $0xc] sm:$0xf]
    %v707 = vld [vmem:[%s5 + $0x10] sm:$0xf]
    %v708 = vld [vmem:[%s5 + $0x14] sm:$0xf]
    %v709 = vld [vmem:[%s5 + $0x18] sm:$0xf]
    %v710 = vld [vmem:[%s5 + $0x1c] sm:$0xf]
    %v711 = vld [vmem:[%s5 + $0x20] sm:$0xf]
    %v712 = vld [vmem:[%s5 + $0x24] sm:$0xf]
    %v713 = vld [vmem:[%s5 + $0x28] sm:$0xf]
    %v714 = vld [vmem:[%s5 + $0x2c] sm:$0xf]
    %v715 = vld [vmem:[%s5 + $0x30] sm:$0xf]
    %v716 = vld [vmem:[%s5 + $0x34] sm:$0xf]
    %v717 = vld [vmem:[%s5 + $0x38] sm:$0xf]
    %v718 = vld [vmem:[%s5 + $0x3c] sm:$0xf]
    %v719 = vld [vmem:[%s6] sm:$0x1]
    %v721 = vlaneseq
    %v722 = vshrl.u32 %v721, 7
    %v723 = vsub.s32 0, %v722
    %v724 = vrot.slane %v719, %v723
    %v742 = vunpack.c.l.b16 %v703
    %v743 = vunpack.c.l.b16 %v704
    %v744 = vunpack.c.l.b16 %v705
    %v745 = vunpack.c.l.b16 %v706
    %v746 = vunpack.c.l.b16 %v707
    %v747 = vunpack.c.l.b16 %v708
    %v748 = vunpack.c.l.b16 %v709
    %v749 = vunpack.c.l.b16 %v710
    %v750 = vunpack.c.l.b16 %v711
    %v751 = vunpack.c.l.b16 %v712
    %v752 = vunpack.c.l.b16 %v713
    %v753 = vunpack.c.l.b16 %v714
    %v754 = vunpack.c.l.b16 %v715
    %v755 = vunpack.c.l.b16 %v716
    %v756 = vunpack.c.l.b16 %v717
    %v757 = vunpack.c.l.b16 %v718
    %v758 = vpack.c.b16 %v743, %v742
    %v759 = vpack.c.b16 %v745, %v744
    %v760 = vpack.c.b16 %v747, %v746
    %v761 = vpack.c.b16 %v749, %v748
    %v762 = vpack.c.b16 %v751, %v750
    %v763 = vpack.c.b16 %v753, %v752
    %v764 = vpack.c.b16 %v755, %v754
    %v765 = vpack.c.b16 %v757, %v756
    %774 = vmatprep.subr.bf16.mxu0 0
    %775 = vmatpush1.bf16.msra.mxu0 %v758
    %776 = vmatprep.subr.bf16.mxu0 0
    %777 = vmatpush1.bf16.msra.mxu0 %v759
    %778 = vmatprep.subr.bf16.mxu0 0
    %779 = vmatpush1.bf16.msra.mxu0 %v760
    %780 = vmatprep.subr.bf16.mxu0 0
    %781 = vmatpush1.bf16.msra.mxu0 %v761
    %782 = vmatprep.subr.bf16.mxu0 0
    %783 = vmatpush1.bf16.msra.mxu0 %v762
    %784 = vmatprep.subr.bf16.mxu0 0
    %785 = vmatpush1.bf16.msra.mxu0 %v763
    %786 = vmatprep.subr.bf16.mxu0 0
    %787 = vmatpush1.bf16.msra.mxu0 %v764
    %788 = vmatprep.subr.bf16.mxu0 0
    %789 = vmatpush1.bf16.msra.mxu0 %v765
    %790 = vmatprep.subr.bf16.mxu0 0
    %791 = vmatpush1.bf16.msra.mxu0 0
    %792 = vmatprep.subr.bf16.mxu0 0
    %793 = vmatpush1.bf16.msra.mxu0 0
    %794 = vmatprep.subr.bf16.mxu0 0
    %795 = vmatpush1.bf16.msra.mxu0 0
    %796 = vmatprep.subr.bf16.mxu0 0
    %797 = vmatpush1.bf16.msra.mxu0 0
    %798 = vmatprep.subr.bf16.mxu0 0
    %799 = vmatpush1.bf16.msra.mxu0 0
    %800 = vmatprep.subr.bf16.mxu0 0
    %801 = vmatpush1.bf16.msra.mxu0 0
    %802 = vmatprep.subr.bf16.mxu0 0
    %803 = vmatpush1.bf16.msra.mxu0 0
    %804 = vmatprep.subr.bf16.mxu0 0
    %805 = vmatpush1.bf16.msra.mxu0 0
    %806 = vmatprep.mubr.bf16.mxu0 0
    %807 = vmatmul.mubr.bf16.gmra.mrb[0].mxu0 %v702
    %v808 = vpop.f32.mrb[0].mxu0
    %v809 = vadd.f32 %v724, %v808
    %v810 = vpop.f32.mrb[0].mxu0
    %v811 = vpop.f32.mrb[0].mxu0
    %v812 = vpop.f32.mrb[0].mxu0
    %813 = vdwg.mxu0
    %v814 = vlaneseq
    %v815 = vand.u32 %v814, 127
    %vm816 = vcmp.lt.s32.totalorder %v815, 10
    %v817 = vsel %vm816, %v809, -1e+30
    %818 = vmax.xlane.f32.xlu0 %v817
    %v819 = vpop.xlane.xlu0 %818
    %v820 = vsub.f32 %v817, %v819
    %v821 = vmul.f32 %v820, 1.442695
    %v822 = vpow.pop %v821
    %823 = vadd.xlane.f32.xlu0 %v822
    %v824 = vpop.xlane.xlu0 %823
    %v825 = vlog2.pop %v824
    %v826 = vmul.f32 %v825, 0.6931472
    %v827 = vsub.f32 %v820, %v826
    %828 = vst [vmem:[#allocation2] sm:$0xff] %v827
    // Predicated region
    $region30: #{_mnist_fc_forward_impl.1} parent=1 // pred_check
      _
    $region31: #{_mnist_fc_forward_impl.1} parent=1 // pred_check_branch
      %830 = sbr.rel (0) target = $region33
    $region32: #{_mnist_fc_forward_impl.1} parent=1 // pred_region
      %s832 = ssub.s32 128, 128
      %833 = vsyncadd [#allocation3], %s832
      %s835 = sshll.u32 [#allocation2], 4
      %s836 = int_to_ptr.vmem [resolvable:$true] %s835
      %838 = dma.vmem_to_hbm [thread:$0]  %s836, 128, %s7, [#allocation3]
    $region33: #{_mnist_fc_forward_impl.1} parent=1 // pred_fallthru
      _
    // Predicated region
    $region34: #{_mnist_fc_forward_impl.1} parent=1 // pred_check
      _
    $region35: #{_mnist_fc_forward_impl.1} parent=1 // pred_check_branch
      %840 = sbr.rel (0) target = $region37
    $region36: #{_mnist_fc_forward_impl.1} parent=1 // pred_region
      %841 = dma.done [#allocation3], 128
    $region37: #{_mnist_fc_forward_impl.1} parent=1 // pred_fallthru
      _
    %842 = vsyncpa [#allocation3], 1

</llo_original>
